<compile_context>
chip_gen: v5e
topology: v5e:2x2
jax: 0.10.0
libtpu: 0.0.40
codegen_flags: <defaults>
</compile_context>

<pallas_src>
import jax
import jax.numpy as jnp
from jax.experimental import pallas as pl
from jax.experimental.pallas import tpu as pltpu

HIDDEN = 64              # logical hidden width of the PyTorch module
H_PAD = 128              # lane-dense padded width for hidden activations / output
_MIN_SPLIT_ROWS = 1024   # only force a >=2-step grid when each half stays big


def _round_up(n, m):
    return ((n + m - 1) // m) * m


def _vmem_budget_bytes():
    """Generation-aware scoped-VMEM budget with headroom (v7x phys = 64 MiB/TC)."""
    try:
        phys = int(pltpu.get_tpu_info().vmem_capacity_bytes)
    except Exception:
        phys = 64 << 20  # conservative fallback: v7x per-TensorCore VMEM
    return min(phys * 3 // 4, 96 << 20)


def _qnet_kernel(x_ref, w1_ref, w2_ref, w3_ref, b_ref, out_ref):
    # x_ref:   (TB, F) f32  -- cast to compute dtype here (VPU op hidden under
    #                          MXU/DMA slack; saves a wrapper-side HBM pass)
    # w1_ref:  (F, 128), w2_ref/w3_ref: (128, 128)  compute dtype
    # b_ref:   (3, 128) f32 (rows = fc1/fc2/fc3 bias, zero-padded)
    # out_ref: (TB, 128)    lane-dense; logical output in first out_size cols
    x = x_ref[...].astype(w1_ref.dtype)
    b = b_ref[...]

    h1 = jnp.dot(x, w1_ref[...], preferred_element_type=jnp.float32) + b[0, :]
    h1 = jnp.maximum(h1, 0.0)

    h2 = jnp.dot(h1.astype(w2_ref.dtype), w2_ref[...],
                 preferred_element_type=jnp.float32) + b[1, :]
    h2 = jnp.maximum(h2, 0.0)

    h3 = jnp.dot(h2.astype(w3_ref.dtype), w3_ref[...],
                 preferred_element_type=jnp.float32) + b[2, :]
    out_ref[...] = h3.astype(out_ref.dtype)


def prepare_params(params, compute_dtype=jnp.float32):
    """Pad weights to lane-dense widths, pack biases, and cast once.

    Zero padding is exact: relu(0 + 0) = 0 and zero weight rows contribute
    nothing downstream. On v5e prefer compute_dtype=jnp.bfloat16 (MXU-native,
    halves weight DMA); accumulation stays f32 either way.
    """
    w1, b1, w2, b2, w3, b3 = params
    in_f, hidden = w1.shape
    out_f = w3.shape[1]
    assert hidden <= H_PAD and w2.shape[1] <= H_PAD and out_f <= H_PAD, (
        "hidden and output widths must be <= 128 for the lane-dense padding")

    def pad_w(w, rows, cols):
        return jnp.pad(w, ((0, rows - w.shape[0]), (0, cols - w.shape[1])))

    w1p = pad_w(w1, in_f, H_PAD).astype(compute_dtype)
    w2p = pad_w(w2, H_PAD, H_PAD).astype(compute_dtype)
    w3p = pad_w(w3, H_PAD, H_PAD).astype(compute_dtype)

    def pad_b(b):
        b = b.reshape(-1)
        return jnp.pad(b, (0, H_PAD - b.shape[0]))

    bias_pack = jnp.stack([pad_b(b1), pad_b(b2), pad_b(b3)]).astype(jnp.float32)
    return (w1p, w2p, w3p, bias_pack)


def _choose_tile(B, F, block_b, x_bytes, out_bytes, w_bytes, budget):
    tb = min(block_b, _round_up(B, 8))
    # Ensure >=2 grid steps at large B so the ("parallel",) batch axis shards
    # across both TensorCores on v7x (negligible extra step cost on 1-TC chips
    # at these tile sizes).
    if B >= 2 * _MIN_SPLIT_ROWS:
        tb = min(tb, _round_up(pl.cdiv(B, 2), 8))
    tb = max(tb, 8)

    # Conservative per-tile working-set estimate:
    #   x tile (double-buffered) + out tile (double-buffered)
    #   + f32 in-kernel temporaries (x cast / h1 / h2 / h3)
    #   + weights & biases (counted double in case Buffered(1) is unsupported).
    weights = 2 * ((F + 2 * H_PAD) * H_PAD * w_bytes + 3 * H_PAD * 4)

    def usage(t):
        per_row = 2 * F * x_bytes + 2 * H_PAD * out_bytes + 4 * H_PAD * 4
        return t * per_row + weights

    while tb > 8 and usage(tb) > budget:
        tb = max(8, _round_up(tb // 2, 8))
    return tb


def _xla_forward(x, prepared, output_size, out_dtype):
    """Plain-XLA path for small batches (kernel overhead can't be amortized)."""
    w1p, w2p, w3p, b = prepared
    cdt = w1p.dtype
    h = jnp.maximum(
        jnp.dot(x.astype(cdt), w1p, preferred_element_type=jnp.float32) + b[0], 0.0)
    h = jnp.maximum(
        jnp.dot(h.astype(cdt), w2p, preferred_element_type=jnp.float32) + b[1], 0.0)
    y = jnp.dot(h.astype(cdt), w3p, preferred_element_type=jnp.float32) + b[2]
    return y[:, :output_size].astype(out_dtype)


def resource_q_network(x, prepared, output_size, *, block_b=8192,
                       out_dtype=jnp.float32, slice_output=True,
                       min_pallas_batch=2048, force_pallas=False):
    """Forward pass. x: (B, input_size) f32.

    Returns (B, output_size) in out_dtype when slice_output=True; otherwise the
    padded (B_pad, 128) block (logical result in the first output_size lanes),
    which avoids an extra strided XLA copy when the consumer (e.g. argmax over
    Q-values) can mask lanes itself.
    """
    w1p, w2p, w3p, bias_pack = prepared
    B, F = x.shape

    if not force_pallas and B < min_pallas_batch:
        return _xla_forward(x, prepared, output_size, out_dtype)

    budget = _vmem_budget_bytes()
    tb = _choose_tile(B, F, block_b=block_b,
                      x_bytes=x.dtype.itemsize,
                      out_bytes=jnp.dtype(out_dtype).itemsize,
                      w_bytes=w1p.dtype.itemsize,
                      budget=budget)
    n_blocks = pl.cdiv(B, tb)
    b_pad = n_blocks * tb

    xp = jnp.pad(x, ((0, b_pad - B), (0, 0))) if b_pad != B else x

    def call(single_buffer_weights):
        if single_buffer_weights:
            def resident(shape):
                return pl.BlockSpec(shape, lambda i: (0,) * len(shape),
                                    pipeline_mode=pl.Buffered(1))
        else:
            def resident(shape):
                return pl.BlockSpec(shape, lambda i: (0,) * len(shape))
        return pl.pallas_call(
            _qnet_kernel,
            out_shape=jax.ShapeDtypeStruct((b_pad, H_PAD), out_dtype),
            grid=(n_blocks,),
            in_specs=[
                pl.BlockSpec((tb, F), lambda i: (i, 0)),  # x: tiled over batch
                resident(w1p.shape),                      # weights: VMEM-resident
                resident(w2p.shape),
                resident(w3p.shape),
                resident(bias_pack.shape),                # packed biases (1 DMA)
            ],
            out_specs=pl.BlockSpec((tb, H_PAD), lambda i: (i, 0)),
            compiler_params=pltpu.CompilerParams(
                dimension_semantics=("parallel",),
                vmem_limit_bytes=budget,
            ),
        )(xp, w1p, w2p, w3p, bias_pack)

    try:
        out = call(single_buffer_weights=True)
    except Exception:
        # Fallback for JAX versions without BlockSpec(pipeline_mode=pl.Buffered(1)).
        out = call(single_buffer_weights=False)

    if slice_output:
        return out[:B, :output_size]
    return out


def init_params(key, input_size, output_size, hidden=HIDDEN):
    """PyTorch-Linear-style init U(-1/sqrt(fan_in), 1/sqrt(fan_in)).
    Weights stored as (in_features, out_features); biases as (1, out_features)."""
    keys = jax.random.split(key, 6)

    def linear(kw, kb, fan_in, fan_out):
        bound = 1.0 / jnp.sqrt(jnp.float32(fan_in))
        w = jax.random.uniform(kw, (fan_in, fan_out), jnp.float32, -bound, bound)
        b = jax.random.uniform(kb, (1, fan_out), jnp.float32, -bound, bound)
        return w, b

    w1, b1 = linear(keys[0], keys[1], input_size, hidden)
    w2, b2 = linear(keys[2], keys[3], hidden, hidden)
    w3, b3 = linear(keys[4], keys[5], hidden, output_size)
    return (w1, b1, w2, b2, w3, b3)


def _reference(x, params):
    w1, b1, w2, b2, w3, b3 = params
    h1 = jnp.maximum(x @ w1 + b1, 0.0)
    h2 = jnp.maximum(h1 @ w2 + b2, 0.0)
    return h2 @ w3 + b3


if __name__ == "__main__":
    input_size = 8     # resource-state features
    output_size = 4    # allocation actions
    batch = 64         # small demo shape; force_pallas exercises the kernel

    key = jax.random.PRNGKey(0)
    k_params, k_x = jax.random.split(key)
    params = init_params(k_params, input_size, output_size)
    x = jax.random.normal(k_x, (batch, input_size), jnp.float32)

    ref = _reference(x, params)

    # f32 compute + f32 output: strict check of the Pallas path.
    prep_f32 = prepare_params(params, compute_dtype=jnp.float32)
    out = jax.block_until_ready(
        resource_q_network(x, prep_f32, output_size, force_pallas=True))
    assert out.shape == (batch, output_size)
    assert jnp.allclose(out, ref, atol=1e-5, rtol=1e-5), "f32 mismatch vs reference"

    # bf16 compute + bf16 output (perf path: MXU-native, halves weight DMA and
    # output writeback; f32 accumulation kept via preferred_element_type).
    prep_bf16 = prepare_params(params, compute_dtype=jnp.bfloat16)
    out_bf16 = jax.block_until_ready(
        resource_q_network(x, prep_bf16, output_size,
                           out_dtype=jnp.bfloat16, force_pallas=True))
    assert out_bf16.shape == (batch, output_size)
    assert jnp.allclose(out_bf16.astype(jnp.float32), ref, atol=5e-2, rtol=5e-2), \
        "bf16 mismatch vs reference"

    # Small-batch auto path: gated to plain XLA fusion (overhead dominates the
    # Pallas path at tiny B on every TPU generation).
    out_xla = jax.block_until_ready(resource_q_network(x, prep_f32, output_size))
    assert jnp.allclose(out_xla, ref, atol=1e-5, rtol=1e-5), "XLA gate path mismatch"

    print("KERNEL_OK")
</pallas_src>

<mosaic_0001>
module attributes {stable_mosaic.version = 11 : i64} {
  func.func @_qnet_kernel(%arg0: i32, %arg1: memref<64x8xf32, #tpu.memory_space<vmem>>, %arg2: memref<8x128xf32, #tpu.memory_space<vmem>>, %arg3: memref<128x128xf32, #tpu.memory_space<vmem>>, %arg4: memref<128x128xf32, #tpu.memory_space<vmem>>, %arg5: memref<3x128xf32, #tpu.memory_space<vmem>>, %arg6: memref<64x128xf32, #tpu.memory_space<vmem>>) attributes {dimension_semantics = [#tpu.dimension_semantics<parallel>], iteration_bounds = array<i64: 1>, scalar_prefetch = 0 : i64, scratch_operands = 0 : i64, tpu.core_type = #tpu.core_type<tc>, window_params = [{transform_indices = @transform_0, window_bounds = array<i64: 64, 8>}, {pipeline_mode = #tpu.pipeline_mode<synchronous>, transform_indices = @transform_1, window_bounds = array<i64: 8, 128>}, {pipeline_mode = #tpu.pipeline_mode<synchronous>, transform_indices = @transform_2, window_bounds = array<i64: 128, 128>}, {pipeline_mode = #tpu.pipeline_mode<synchronous>, transform_indices = @transform_3, window_bounds = array<i64: 128, 128>}, {pipeline_mode = #tpu.pipeline_mode<synchronous>, transform_indices = @transform_4, window_bounds = array<i64: 3, 128>}, {transform_indices = @transform_5, window_bounds = array<i64: 64, 128>}]} {
    %c0 = arith.constant 0 : index
    %c0_0 = arith.constant 0 : index
    %0 = vector.load %arg1[%c0, %c0_0] : memref<64x8xf32, #tpu.memory_space<vmem>>, vector<64x8xf32>
    %c0_1 = arith.constant 0 : index
    %c0_2 = arith.constant 0 : index
    %1 = vector.load %arg5[%c0_1, %c0_2] : memref<3x128xf32, #tpu.memory_space<vmem>>, vector<3x128xf32>
    %c0_3 = arith.constant 0 : index
    %c0_4 = arith.constant 0 : index
    %2 = vector.load %arg2[%c0_3, %c0_4] : memref<8x128xf32, #tpu.memory_space<vmem>>, vector<8x128xf32>
    %cst = arith.constant dense<0.000000e+00> : vector<64x128xf32>
    %3 = tpu.matmul %0, %2, %cst {dimension_numbers = #tpu.dot_dimension_numbers<[1], [0], [0], [1], [0, 0, 1, 1], [], []>} : vector<64x8xf32>, vector<8x128xf32>, vector<64x128xf32> -> vector<64x128xf32>
    %4 = vector.extract_strided_slice %1 {offsets = [0, 0], sizes = [1, 128], strides = [1, 1]} : vector<3x128xf32> to vector<1x128xf32>
    %5 = vector.shape_cast %4 : vector<1x128xf32> to vector<128xf32>
    %6 = vector.shape_cast %5 : vector<128xf32> to vector<1x128xf32>
    %7 = vector.broadcast %6 : vector<1x128xf32> to vector<64x128xf32>
    %8 = arith.addf %3, %7 : vector<64x128xf32>
    %cst_5 = arith.constant 0.000000e+00 : f32
    %9 = vector.broadcast %cst_5 : f32 to vector<64x128xf32>
    %10 = arith.maximumf %8, %9 : vector<64x128xf32>
    %c0_6 = arith.constant 0 : index
    %c0_7 = arith.constant 0 : index
    %11 = vector.load %arg3[%c0_6, %c0_7] : memref<128x128xf32, #tpu.memory_space<vmem>>, vector<128x128xf32>
    %cst_8 = arith.constant dense<0.000000e+00> : vector<64x128xf32>
    %12 = tpu.matmul %10, %11, %cst_8 {dimension_numbers = #tpu.dot_dimension_numbers<[1], [0], [0], [1], [0, 0, 1, 1], [], []>} : vector<64x128xf32>, vector<128x128xf32>, vector<64x128xf32> -> vector<64x128xf32>
    %13 = vector.extract_strided_slice %1 {offsets = [1, 0], sizes = [1, 128], strides = [1, 1]} : vector<3x128xf32> to vector<1x128xf32>
    %14 = vector.shape_cast %13 : vector<1x128xf32> to vector<128xf32>
    %15 = vector.shape_cast %14 : vector<128xf32> to vector<1x128xf32>
    %16 = vector.broadcast %15 : vector<1x128xf32> to vector<64x128xf32>
    %17 = arith.addf %12, %16 : vector<64x128xf32>
    %cst_9 = arith.constant 0.000000e+00 : f32
    %18 = vector.broadcast %cst_9 : f32 to vector<64x128xf32>
    %19 = arith.maximumf %17, %18 : vector<64x128xf32>
    %c0_10 = arith.constant 0 : index
    %c0_11 = arith.constant 0 : index
    %20 = vector.load %arg4[%c0_10, %c0_11] : memref<128x128xf32, #tpu.memory_space<vmem>>, vector<128x128xf32>
    %cst_12 = arith.constant dense<0.000000e+00> : vector<64x128xf32>
    %21 = tpu.matmul %19, %20, %cst_12 {dimension_numbers = #tpu.dot_dimension_numbers<[1], [0], [0], [1], [0, 0, 1, 1], [], []>} : vector<64x128xf32>, vector<128x128xf32>, vector<64x128xf32> -> vector<64x128xf32>
    %22 = vector.extract_strided_slice %1 {offsets = [2, 0], sizes = [1, 128], strides = [1, 1]} : vector<3x128xf32> to vector<1x128xf32>
    %23 = vector.shape_cast %22 : vector<1x128xf32> to vector<128xf32>
    %24 = vector.shape_cast %23 : vector<128xf32> to vector<1x128xf32>
    %25 = vector.broadcast %24 : vector<1x128xf32> to vector<64x128xf32>
    %26 = arith.addf %21, %25 : vector<64x128xf32>
    %c0_13 = arith.constant 0 : index
    %c0_14 = arith.constant 0 : index
    %27 = vector.load %arg6[%c0_13, %c0_14] : memref<64x128xf32, #tpu.memory_space<vmem>>, vector<64x128xf32>
    tpu.vector_store %arg6[%c0_13, %c0_14], %26 {strides = array<i32>} : memref<64x128xf32, #tpu.memory_space<vmem>>, vector<64x128xf32>,
    return
  }
  func.func @transform_0(%arg0: i32) -> (i32, i32) {
    %c0_i32 = arith.constant 0 : i32
    %c0_i32_0 = arith.constant 0 : i32
    return %arg0, %c0_i32 : i32, i32
  }
  func.func @transform_1(%arg0: i32) -> (i32, i32) {
    %c0_i32 = arith.constant 0 : i32
    %c0_i32_0 = arith.constant 0 : i32
    %c0_i32_1 = arith.constant 0 : i32
    return %c0_i32, %c0_i32_0 : i32, i32
  }
  func.func @transform_2(%arg0: i32) -> (i32, i32) {
    %c0_i32 = arith.constant 0 : i32
    %c0_i32_0 = arith.constant 0 : i32
    %c0_i32_1 = arith.constant 0 : i32
    return %c0_i32, %c0_i32_0 : i32, i32
  }
  func.func @transform_3(%arg0: i32) -> (i32, i32) {
    %c0_i32 = arith.constant 0 : i32
    %c0_i32_0 = arith.constant 0 : i32
    %c0_i32_1 = arith.constant 0 : i32
    return %c0_i32, %c0_i32_0 : i32, i32
  }
  func.func @transform_4(%arg0: i32) -> (i32, i32) {
    %c0_i32 = arith.constant 0 : i32
    %c0_i32_0 = arith.constant 0 : i32
    %c0_i32_1 = arith.constant 0 : i32
    return %c0_i32, %c0_i32_0 : i32, i32
  }
  func.func @transform_5(%arg0: i32) -> (i32, i32) {
    %c0_i32 = arith.constant 0 : i32
    %c0_i32_0 = arith.constant 0 : i32
    return %arg0, %c0_i32 : i32, i32
  }
}

module attributes {stable_mosaic.version = 11 : i64} {
  func.func @_qnet_kernel(%arg0: i32, %arg1: memref<64x8xf32, #tpu.memory_space<vmem>>, %arg2: memref<8x128xf32, #tpu.memory_space<vmem>>, %arg3: memref<128x128xf32, #tpu.memory_space<vmem>>, %arg4: memref<128x128xf32, #tpu.memory_space<vmem>>, %arg5: memref<3x128xf32, #tpu.memory_space<vmem>>, %arg6: memref<64x128xf32, #tpu.memory_space<vmem>>) attributes {dimension_semantics = [#tpu.dimension_semantics<parallel>], iteration_bounds = array<i64: 1>, scalar_prefetch = 0 : i64, scratch_operands = 0 : i64, tpu.core_type = #tpu.core_type<tc>, window_params = [{transform_indices = @transform_0, window_bounds = array<i64: 64, 8>}, {pipeline_mode = #tpu.pipeline_mode<synchronous>, transform_indices = @transform_1, window_bounds = array<i64: 8, 128>}, {pipeline_mode = #tpu.pipeline_mode<synchronous>, transform_indices = @transform_2, window_bounds = array<i64: 128, 128>}, {pipeline_mode = #tpu.pipeline_mode<synchronous>, transform_indices = @transform_3, window_bounds = array<i64: 128, 128>}, {pipeline_mode = #tpu.pipeline_mode<synchronous>, transform_indices = @transform_4, window_bounds = array<i64: 3, 128>}, {transform_indices = @transform_5, window_bounds = array<i64: 64, 128>}]} {
    %c0 = arith.constant 0 : index
    %c0_0 = arith.constant 0 : index
    %0 = vector.load %arg1[%c0, %c0_0] : memref<64x8xf32, #tpu.memory_space<vmem>>, vector<64x8xf32>
    %c0_1 = arith.constant 0 : index
    %c0_2 = arith.constant 0 : index
    %1 = vector.load %arg5[%c0_1, %c0_2] : memref<3x128xf32, #tpu.memory_space<vmem>>, vector<3x128xf32>
    %c0_3 = arith.constant 0 : index
    %c0_4 = arith.constant 0 : index
    %2 = vector.load %arg2[%c0_3, %c0_4] : memref<8x128xf32, #tpu.memory_space<vmem>>, vector<8x128xf32>
    %cst = arith.constant dense<0.000000e+00> : vector<64x128xf32>
    %3 = tpu.matmul %0, %2, %cst {dimension_numbers = #tpu.dot_dimension_numbers<[1], [0], [0], [1], [0, 0, 1, 1], [], []>} : vector<64x8xf32>, vector<8x128xf32>, vector<64x128xf32> -> vector<64x128xf32>
    %4 = vector.extract_strided_slice %1 {offsets = [0, 0], sizes = [1, 128], strides = [1, 1]} : vector<3x128xf32> to vector<1x128xf32>
    %5 = vector.shape_cast %4 : vector<1x128xf32> to vector<128xf32>
    %6 = vector.shape_cast %5 : vector<128xf32> to vector<1x128xf32>
    %7 = vector.broadcast %6 : vector<1x128xf32> to vector<64x128xf32>
    %8 = arith.addf %3, %7 : vector<64x128xf32>
    %cst_5 = arith.constant 0.000000e+00 : f32
    %9 = vector.broadcast %cst_5 : f32 to vector<64x128xf32>
    %10 = arith.maximumf %8, %9 : vector<64x128xf32>
    %c0_6 = arith.constant 0 : index
    %c0_7 = arith.constant 0 : index
    %11 = vector.load %arg3[%c0_6, %c0_7] : memref<128x128xf32, #tpu.memory_space<vmem>>, vector<128x128xf32>
    %cst_8 = arith.constant dense<0.000000e+00> : vector<64x128xf32>
    %12 = tpu.matmul %10, %11, %cst_8 {dimension_numbers = #tpu.dot_dimension_numbers<[1], [0], [0], [1], [0, 0, 1, 1], [], []>} : vector<64x128xf32>, vector<128x128xf32>, vector<64x128xf32> -> vector<64x128xf32>
    %13 = vector.extract_strided_slice %1 {offsets = [1, 0], sizes = [1, 128], strides = [1, 1]} : vector<3x128xf32> to vector<1x128xf32>
    %14 = vector.shape_cast %13 : vector<1x128xf32> to vector<128xf32>
    %15 = vector.shape_cast %14 : vector<128xf32> to vector<1x128xf32>
    %16 = vector.broadcast %15 : vector<1x128xf32> to vector<64x128xf32>
    %17 = arith.addf %12, %16 : vector<64x128xf32>
    %cst_9 = arith.constant 0.000000e+00 : f32
    %18 = vector.broadcast %cst_9 : f32 to vector<64x128xf32>
    %19 = arith.maximumf %17, %18 : vector<64x128xf32>
    %c0_10 = arith.constant 0 : index
    %c0_11 = arith.constant 0 : index
    %20 = vector.load %arg4[%c0_10, %c0_11] : memref<128x128xf32, #tpu.memory_space<vmem>>, vector<128x128xf32>
    %cst_12 = arith.constant dense<0.000000e+00> : vector<64x128xf32>
    %21 = tpu.matmul %19, %20, %cst_12 {dimension_numbers = #tpu.dot_dimension_numbers<[1], [0], [0], [1], [0, 0, 1, 1], [], []>} : vector<64x128xf32>, vector<128x128xf32>, vector<64x128xf32> -> vector<64x128xf32>
    %22 = vector.extract_strided_slice %1 {offsets = [2, 0], sizes = [1, 128], strides = [1, 1]} : vector<3x128xf32> to vector<1x128xf32>
    %23 = vector.shape_cast %22 : vector<1x128xf32> to vector<128xf32>
    %24 = vector.shape_cast %23 : vector<128xf32> to vector<1x128xf32>
    %25 = vector.broadcast %24 : vector<1x128xf32> to vector<64x128xf32>
    %26 = arith.addf %21, %25 : vector<64x128xf32>
    %c0_13 = arith.constant 0 : index
    %c0_14 = arith.constant 0 : index
    %27 = vector.load %arg6[%c0_13, %c0_14] : memref<64x128xf32, #tpu.memory_space<vmem>>, vector<64x128xf32>
    tpu.vector_store %arg6[%c0_13, %c0_14], %26 {strides = array<i32>} : memref<64x128xf32, #tpu.memory_space<vmem>>, vector<64x128xf32>,
    return
  }
  func.func @transform_0(%arg0: i32) -> (i32, i32) {
    %c0_i32 = arith.constant 0 : i32
    %c0_i32_0 = arith.constant 0 : i32
    return %arg0, %c0_i32 : i32, i32
  }
  func.func @transform_1(%arg0: i32) -> (i32, i32) {
    %c0_i32 = arith.constant 0 : i32
    %c0_i32_0 = arith.constant 0 : i32
    %c0_i32_1 = arith.constant 0 : i32
    return %c0_i32, %c0_i32_0 : i32, i32
  }
  func.func @transform_2(%arg0: i32) -> (i32, i32) {
    %c0_i32 = arith.constant 0 : i32
    %c0_i32_0 = arith.constant 0 : i32
    %c0_i32_1 = arith.constant 0 : i32
    return %c0_i32, %c0_i32_0 : i32, i32
  }
  func.func @transform_3(%arg0: i32) -> (i32, i32) {
    %c0_i32 = arith.constant 0 : i32
    %c0_i32_0 = arith.constant 0 : i32
    %c0_i32_1 = arith.constant 0 : i32
    return %c0_i32, %c0_i32_0 : i32, i32
  }
  func.func @transform_4(%arg0: i32) -> (i32, i32) {
    %c0_i32 = arith.constant 0 : i32
    %c0_i32_0 = arith.constant 0 : i32
    %c0_i32_1 = arith.constant 0 : i32
    return %c0_i32, %c0_i32_0 : i32, i32
  }
  func.func @transform_5(%arg0: i32) -> (i32, i32) {
    %c0_i32 = arith.constant 0 : i32
    %c0_i32_0 = arith.constant 0 : i32
    return %arg0, %c0_i32 : i32, i32
  }
}

</mosaic_0001>

<llo_original>
// kernel: tpu_custom_call.1
$region0: #{tpu_custom_call.1}
  #allocation0 [shape = 'u32[]', space=smem, size = 0x4, offset = 0x4, fixed_abs, tag = 'smem constant byte address 0x4 - core index']
  #allocation1 [shape = 'u32[72,128]{1,0:T(1,128)}', space=vmem, size = 0x9000, scoped, tag = 'internal scratch']
  %s0 = inlined_call_operand.vmem [shape: f32[64,8], index: 0, kind: input, shape index: {}]
  %s1 = inlined_call_operand.vmem [shape: f32[8,128], index: 1, kind: input, shape index: {}]
  %s2 = inlined_call_operand.hbm [shape: f32[128,128], index: 2, kind: input, shape index: {}]
  %s3 = inlined_call_operand.hbm [shape: f32[128,128], index: 3, kind: input, shape index: {}]
  %s4 = inlined_call_operand.vmem [shape: f32[3,128], index: 4, kind: input, shape index: {}]
  %s5 = inlined_call_operand.hbm [shape: f32[64,128], index: 5, kind: output, shape index: {}]
  %s6 = sld [smem:[#allocation0]]
  $region38: #{tpu_custom_call.1} parent=0
    _
  %s8 = ssub.s32 1, %s6
  %s9 = scalar_select 0, %s8, %s6
  $region1: #{tpu_custom_call.1} parent=0
    #allocation2 [shape = 'u8[65536]{0}', space=vmem, size = 0x10000, scoped, tag = 'input window, operand 2, single buffered']
    #allocation3 [shape = 's32[1]{0}', space=sflag, size = 0x4, scoped, tag = 'scoped memory for tpu_custom_call.1']
    #allocation4 [shape = 's32[1]{0}', space=sflag, size = 0x4, scoped, tag = 'scoped memory for tpu_custom_call.1']
    #allocation5 [shape = 'u8[65536]{0}', space=vmem, size = 0x10000, scoped, tag = 'input window, operand 3, single buffered']
    #allocation6 [shape = 's32[1]{0}', space=sflag, size = 0x4, scoped, tag = 'scoped memory for tpu_custom_call.1']
    #allocation7 [shape = 'u8[32768]{0}', space=vmem, size = 0x8000, scoped, tag = 'output window, operand 0, single buffered']
    %10 = vsyncpa [#allocation3], 0
    %11 = vsyncpa [#allocation6], 0
    %12 = vsyncpa [#allocation4], 0
    // Predicated region
    $region2: #{tpu_custom_call.1} parent=1 // pred_check
      _
    $region3: #{tpu_custom_call.1} parent=1 // pred_check_branch
      %14 = sbr.rel (0) target = $region5
    $region4: #{tpu_custom_call.1} parent=1 // pred_region
      _
    $region5: #{tpu_custom_call.1} parent=1 // pred_fallthru
      _
    // Predicated region
    $region6: #{tpu_custom_call.1} parent=1 // pred_check
      _
    $region7: #{tpu_custom_call.1} parent=1 // pred_check_branch
      %16 = sbr.rel (0) target = $region9
    $region8: #{tpu_custom_call.1} parent=1 // pred_region
      _
    $region9: #{tpu_custom_call.1} parent=1 // pred_fallthru
      _
    // Predicated region
    $region10: #{tpu_custom_call.1} parent=1 // pred_check
      _
    $region11: #{tpu_custom_call.1} parent=1 // pred_check_branch
      %18 = sbr.rel (0) target = $region13
    $region12: #{tpu_custom_call.1} parent=1 // pred_region
      %20 = vsyncadd [#allocation3], 0
      %s21 = sshll.u32 %s2, 4
      %s22 = int_to_ptr.hbm [resolvable:$true] %s21
      %s23 = sshll.u32 [#allocation2], 4
      %s24 = int_to_ptr.vmem [resolvable:$true] %s23
      %29 = dma.hbm_to_vmem [thread:$0]  %s22, 2048, %s24, [#allocation3], 128, 128, 8
    $region13: #{tpu_custom_call.1} parent=1 // pred_fallthru
      _
    // Predicated region
    $region14: #{tpu_custom_call.1} parent=1 // pred_check
      _
    $region15: #{tpu_custom_call.1} parent=1 // pred_check_branch
      %31 = sbr.rel (0) target = $region17
    $region16: #{tpu_custom_call.1} parent=1 // pred_region
      %33 = vsyncadd [#allocation6], 0
      %s34 = sshll.u32 %s3, 4
      %s35 = int_to_ptr.hbm [resolvable:$true] %s34
      %s36 = sshll.u32 [#allocation5], 4
      %s37 = int_to_ptr.vmem [resolvable:$true] %s36
      %42 = dma.hbm_to_vmem [thread:$0]  %s35, 2048, %s37, [#allocation6], 128, 128, 8
    $region17: #{tpu_custom_call.1} parent=1 // pred_fallthru
      _
    // Predicated region
    $region18: #{tpu_custom_call.1} parent=1 // pred_check
      _
    $region19: #{tpu_custom_call.1} parent=1 // pred_check_branch
      %44 = sbr.rel (0) target = $region21
    $region20: #{tpu_custom_call.1} parent=1 // pred_region
      _
    $region21: #{tpu_custom_call.1} parent=1 // pred_fallthru
      _
    // Predicated region
    $region22: #{tpu_custom_call.1} parent=1 // pred_check
      _
    $region23: #{tpu_custom_call.1} parent=1 // pred_check_branch
      %46 = sbr.rel (0) target = $region25
    $region24: #{tpu_custom_call.1} parent=1 // pred_region
      %48 = dma.done [#allocation3], 2048
    $region25: #{tpu_custom_call.1} parent=1 // pred_fallthru
      _
    // Predicated region
    $region26: #{tpu_custom_call.1} parent=1 // pred_check
      _
    $region27: #{tpu_custom_call.1} parent=1 // pred_check_branch
      %50 = sbr.rel (0) target = $region29
    $region28: #{tpu_custom_call.1} parent=1 // pred_region
      %52 = dma.done [#allocation6], 2048
    $region29: #{tpu_custom_call.1} parent=1 // pred_fallthru
      _
    %v53 = vld [vmem:[%s0] sm:$0xff]
    %v54 = vld [vmem:[%s0 + $0x8] sm:$0xff]
    %v55 = vld [vmem:[%s0 + $0x10] sm:$0xff]
    %v56 = vld [vmem:[%s0 + $0x18] sm:$0xff]
    %v57 = vld [vmem:[%s0 + $0x20] sm:$0xff]
    %v58 = vld [vmem:[%s0 + $0x28] sm:$0xff]
    %v59 = vld [vmem:[%s0 + $0x30] sm:$0xff]
    %v60 = vld [vmem:[%s0 + $0x38] sm:$0xff]
    %v61 = vld [vmem:[%s4] sm:$0x7]
    %v62 = vld [vmem:[%s1] sm:$0xff]
    %v63 = vperm.slane %v61, 0
    %vm64 = vcmask 64512
    %v66 = vsel %vm64, %v53, 0
    %v69 = vsel %vm64, %v54, 0
    %v72 = vsel %vm64, %v55, 0
    %v75 = vsel %vm64, %v56, 0
    %v78 = vsel %vm64, %v57, 0
    %v81 = vsel %vm64, %v58, 0
    %v84 = vsel %vm64, %v59, 0
    %v87 = vsel %vm64, %v60, 0
    %89 = vmatpush.msra.mxu0 0.0
    %90 = vmatpush.msra.mxu0 0.0
    %91 = vmatpush.msra.mxu0 0.0
    %92 = vmatpush.msra.mxu0 0.0
    %93 = vmatpush.msra.mxu0 0.0
    %94 = vmatpush.msra.mxu0 0.0
    %95 = vmatpush.msra.mxu0 0.0
    %96 = vmatpush.msra.mxu0 0.0
    %97 = vmatpush.msra.mxu0 0.0
    %98 = vmatpush.msra.mxu0 0.0
    %99 = vmatpush.msra.mxu0 0.0
    %100 = vmatpush.msra.mxu0 0.0
    %101 = vmatpush.msra.mxu0 0.0
    %102 = vmatpush.msra.mxu0 0.0
    %103 = vmatpush.msra.mxu0 0.0
    %104 = vmatpush.msra.mxu0 %v62
    %105 = vmatmul.f32.gmra.mxu0 %v66
    %v106 = vpop.f32.mrf.mxu0
    %v107 = vadd.f32 %v63, %v106
    %108 = vmatmul.f32.gmra.mxu0 %v69
    %v109 = vpop.f32.mrf.mxu0
    %v110 = vadd.f32 %v63, %v109
    %111 = vmatmul.f32.gmra.mxu0 %v72
    %v112 = vpop.f32.mrf.mxu0
    %v113 = vadd.f32 %v63, %v112
    %114 = vmatmul.f32.gmra.mxu0 %v75
    %v115 = vpop.f32.mrf.mxu0
    %v116 = vadd.f32 %v63, %v115
    %117 = vmatmul.f32.gmra.mxu0 %v78
    %v118 = vpop.f32.mrf.mxu0
    %v119 = vadd.f32 %v63, %v118
    %120 = vmatmul.f32.gmra.mxu0 %v81
    %v121 = vpop.f32.mrf.mxu0
    %v122 = vadd.f32 %v63, %v121
    %123 = vmatmul.f32.gmra.mxu0 %v84
    %v124 = vpop.f32.mrf.mxu0
    %v125 = vadd.f32 %v63, %v124
    %126 = vmatmul.f32.gmra.mxu0 %v87
    %v127 = vpop.f32.mrf.mxu0
    %v128 = vadd.f32 %v63, %v127
    %129 = vdwg.mxu0
    %v130 = vmax.f32 %v107, 0.0
    %v131 = vmax.f32 %v110, 0.0
    %v132 = vmax.f32 %v113, 0.0
    %v133 = vmax.f32 %v116, 0.0
    %v134 = vmax.f32 %v119, 0.0
    %v135 = vmax.f32 %v122, 0.0
    %v136 = vmax.f32 %v125, 0.0
    %v137 = vmax.f32 %v128, 0.0
    %v138 = vld [vmem:[#allocation2] sm:$0xff]
    %v139 = vld [vmem:[#allocation2 + $0x8] sm:$0xff]
    %v140 = vld [vmem:[#allocation2 + $0x10] sm:$0xff]
    %v141 = vld [vmem:[#allocation2 + $0x18] sm:$0xff]
    %v142 = vld [vmem:[#allocation2 + $0x20] sm:$0xff]
    %v143 = vld [vmem:[#allocation2 + $0x28] sm:$0xff]
    %v144 = vld [vmem:[#allocation2 + $0x30] sm:$0xff]
    %v145 = vld [vmem:[#allocation2 + $0x38] sm:$0xff]
    %v146 = vld [vmem:[#allocation2 + $0x40] sm:$0xff]
    %v147 = vld [vmem:[#allocation2 + $0x48] sm:$0xff]
    %v148 = vld [vmem:[#allocation2 + $0x50] sm:$0xff]
    %v149 = vld [vmem:[#allocation2 + $0x58] sm:$0xff]
    %v150 = vld [vmem:[#allocation2 + $0x60] sm:$0xff]
    %v151 = vld [vmem:[#allocation2 + $0x68] sm:$0xff]
    %v152 = vld [vmem:[#allocation2 + $0x70] sm:$0xff]
    %v153 = vld [vmem:[#allocation2 + $0x78] sm:$0xff]
    %v154 = vperm.slane %v61, 1
    %155 = vmatpush.msra.mxu0 %v153
    %156 = vmatpush.msra.mxu0 %v152
    %157 = vmatpush.msra.mxu0 %v151
    %158 = vmatpush.msra.mxu0 %v150
    %159 = vmatpush.msra.mxu0 %v149
    %160 = vmatpush.msra.mxu0 %v148
    %161 = vmatpush.msra.mxu0 %v147
    %162 = vmatpush.msra.mxu0 %v146
    %163 = vmatpush.msra.mxu0 %v145
    %164 = vmatpush.msra.mxu0 %v144
    %165 = vmatpush.msra.mxu0 %v143
    %166 = vmatpush.msra.mxu0 %v142
    %167 = vmatpush.msra.mxu0 %v141
    %168 = vmatpush.msra.mxu0 %v140
    %169 = vmatpush.msra.mxu0 %v139
    %170 = vmatpush.msra.mxu0 %v138
    %171 = vmatmul.f32.gmra.mxu0 %v130
    %v172 = vpop.f32.mrf.mxu0
    %v173 = vadd.f32 %v154, %v172
    %174 = vmatmul.f32.gmra.mxu0 %v131
    %v175 = vpop.f32.mrf.mxu0
    %v176 = vadd.f32 %v154, %v175
    %177 = vmatmul.f32.gmra.mxu0 %v132
    %v178 = vpop.f32.mrf.mxu0
    %v179 = vadd.f32 %v154, %v178
    %180 = vmatmul.f32.gmra.mxu0 %v133
    %v181 = vpop.f32.mrf.mxu0
    %v182 = vadd.f32 %v154, %v181
    %183 = vmatmul.f32.gmra.mxu0 %v134
    %v184 = vpop.f32.mrf.mxu0
    %v185 = vadd.f32 %v154, %v184
    %186 = vmatmul.f32.gmra.mxu0 %v135
    %v187 = vpop.f32.mrf.mxu0
    %v188 = vadd.f32 %v154, %v187
    %189 = vmatmul.f32.gmra.mxu0 %v136
    %v190 = vpop.f32.mrf.mxu0
    %v191 = vadd.f32 %v154, %v190
    %192 = vmatmul.f32.gmra.mxu0 %v137
    %v193 = vpop.f32.mrf.mxu0
    %v194 = vadd.f32 %v154, %v193
    %195 = vdwg.mxu0
    %v196 = vmax.f32 %v173, 0.0
    %v197 = vmax.f32 %v176, 0.0
    %v198 = vmax.f32 %v179, 0.0
    %v199 = vmax.f32 %v182, 0.0
    %v200 = vmax.f32 %v185, 0.0
    %v201 = vmax.f32 %v188, 0.0
    %v202 = vmax.f32 %v191, 0.0
    %v203 = vmax.f32 %v194, 0.0
    %v204 = vld [vmem:[#allocation5] sm:$0xff]
    %v205 = vld [vmem:[#allocation5 + $0x8] sm:$0xff]
    %v206 = vld [vmem:[#allocation5 + $0x10] sm:$0xff]
    %v207 = vld [vmem:[#allocation5 + $0x18] sm:$0xff]
    %v208 = vld [vmem:[#allocation5 + $0x20] sm:$0xff]
    %v209 = vld [vmem:[#allocation5 + $0x28] sm:$0xff]
    %v210 = vld [vmem:[#allocation5 + $0x30] sm:$0xff]
    %v211 = vld [vmem:[#allocation5 + $0x38] sm:$0xff]
    %v212 = vld [vmem:[#allocation5 + $0x40] sm:$0xff]
    %v213 = vld [vmem:[#allocation5 + $0x48] sm:$0xff]
    %v214 = vld [vmem:[#allocation5 + $0x50] sm:$0xff]
    %v215 = vld [vmem:[#allocation5 + $0x58] sm:$0xff]
    %v216 = vld [vmem:[#allocation5 + $0x60] sm:$0xff]
    %v217 = vld [vmem:[#allocation5 + $0x68] sm:$0xff]
    %v218 = vld [vmem:[#allocation5 + $0x70] sm:$0xff]
    %v219 = vld [vmem:[#allocation5 + $0x78] sm:$0xff]
    %v220 = vperm.slane %v61, 2
    %221 = vmatpush.msra.mxu0 %v219
    %222 = vmatpush.msra.mxu0 %v218
    %223 = vmatpush.msra.mxu0 %v217
    %224 = vmatpush.msra.mxu0 %v216
    %225 = vmatpush.msra.mxu0 %v215
    %226 = vmatpush.msra.mxu0 %v214
    %227 = vmatpush.msra.mxu0 %v213
    %228 = vmatpush.msra.mxu0 %v212
    %229 = vmatpush.msra.mxu0 %v211
    %230 = vmatpush.msra.mxu0 %v210
    %231 = vmatpush.msra.mxu0 %v209
    %232 = vmatpush.msra.mxu0 %v208
    %233 = vmatpush.msra.mxu0 %v207
    %234 = vmatpush.msra.mxu0 %v206
    %235 = vmatpush.msra.mxu0 %v205
    %236 = vmatpush.msra.mxu0 %v204
    %237 = vmatmul.f32.gmra.mxu0 %v196
    %v238 = vpop.f32.mrf.mxu0
    %v239 = vadd.f32 %v220, %v238
    %240 = vmatmul.f32.gmra.mxu0 %v197
    %v241 = vpop.f32.mrf.mxu0
    %v242 = vadd.f32 %v220, %v241
    %243 = vmatmul.f32.gmra.mxu0 %v198
    %v244 = vpop.f32.mrf.mxu0
    %v245 = vadd.f32 %v220, %v244
    %246 = vmatmul.f32.gmra.mxu0 %v199
    %v247 = vpop.f32.mrf.mxu0
    %v248 = vadd.f32 %v220, %v247
    %249 = vmatmul.f32.gmra.mxu0 %v200
    %v250 = vpop.f32.mrf.mxu0
    %v251 = vadd.f32 %v220, %v250
    %252 = vmatmul.f32.gmra.mxu0 %v201
    %v253 = vpop.f32.mrf.mxu0
    %v254 = vadd.f32 %v220, %v253
    %255 = vmatmul.f32.gmra.mxu0 %v202
    %v256 = vpop.f32.mrf.mxu0
    %v257 = vadd.f32 %v220, %v256
    %258 = vmatmul.f32.gmra.mxu0 %v203
    %v259 = vpop.f32.mrf.mxu0
    %v260 = vadd.f32 %v220, %v259
    %261 = vdwg.mxu0
    %262 = vst [vmem:[#allocation7] sm:$0xff] %v239
    %263 = vst [vmem:[#allocation7 + $0x8] sm:$0xff] %v242
    %264 = vst [vmem:[#allocation7 + $0x10] sm:$0xff] %v245
    %265 = vst [vmem:[#allocation7 + $0x18] sm:$0xff] %v248
    %266 = vst [vmem:[#allocation7 + $0x20] sm:$0xff] %v251
    %267 = vst [vmem:[#allocation7 + $0x28] sm:$0xff] %v254
    %268 = vst [vmem:[#allocation7 + $0x30] sm:$0xff] %v257
    %269 = vst [vmem:[#allocation7 + $0x38] sm:$0xff] %v260
    // Predicated region
    $region30: #{tpu_custom_call.1} parent=1 // pred_check
      _
    $region31: #{tpu_custom_call.1} parent=1 // pred_check_branch
      %271 = sbr.rel (0) target = $region33
    $region32: #{tpu_custom_call.1} parent=1 // pred_region
      %273 = vsyncadd [#allocation4], 0
      %s274 = sshll.u32 [#allocation7], 4
      %s275 = int_to_ptr.vmem [resolvable:$true] %s274
      %s276 = sshll.u32 %s5, 4
      %s277 = int_to_ptr.hbm [resolvable:$true] %s276
      %282 = dma.vmem_to_hbm [thread:$0]  %s275, 1024, %s277, [#allocation4], 128, 128, 8
    $region33: #{tpu_custom_call.1} parent=1 // pred_fallthru
      _
    // Predicated region
    $region34: #{tpu_custom_call.1} parent=1 // pred_check
      _
    $region35: #{tpu_custom_call.1} parent=1 // pred_check_branch
      %284 = sbr.rel (0) target = $region37
    $region36: #{tpu_custom_call.1} parent=1 // pred_region
      %286 = dma.done [#allocation4], 1024
    $region37: #{tpu_custom_call.1} parent=1 // pred_fallthru
      _
    %287 = vsyncpa [#allocation3], 1
    %288 = vsyncpa [#allocation6], 1
    %289 = vsyncpa [#allocation4], 1

// kernel: tpu_custom_call.1
$region0: #{tpu_custom_call.1}
  #allocation0 [shape = 'u32[]', space=smem, size = 0x4, offset = 0x4, fixed_abs, tag = 'smem constant byte address 0x4 - core index']
  #allocation1 [shape = 'u32[72,128]{1,0:T(1,128)}', space=vmem, size = 0x9000, scoped, tag = 'internal scratch']
  %s0 = inlined_call_operand.vmem [shape: f32[64,8], index: 0, kind: input, shape index: {}]
  %s1 = inlined_call_operand.vmem [shape: f32[8,128], index: 1, kind: input, shape index: {}]
  %s2 = inlined_call_operand.hbm [shape: f32[128,128], index: 2, kind: input, shape index: {}]
  %s3 = inlined_call_operand.hbm [shape: f32[128,128], index: 3, kind: input, shape index: {}]
  %s4 = inlined_call_operand.vmem [shape: f32[3,128], index: 4, kind: input, shape index: {}]
  %s5 = inlined_call_operand.hbm [shape: f32[64,128], index: 5, kind: output, shape index: {}]
  %s6 = sld [smem:[#allocation0]]
  $region38: #{tpu_custom_call.1} parent=0
    _
  %s8 = ssub.s32 1, %s6
  %s9 = scalar_select 0, %s8, %s6
  $region1: #{tpu_custom_call.1} parent=0
    #allocation2 [shape = 'u8[65536]{0}', space=vmem, size = 0x10000, scoped, tag = 'input window, operand 2, single buffered']
    #allocation3 [shape = 's32[1]{0}', space=sflag, size = 0x4, scoped, tag = 'scoped memory for tpu_custom_call.1']
    #allocation4 [shape = 's32[1]{0}', space=sflag, size = 0x4, scoped, tag = 'scoped memory for tpu_custom_call.1']
    #allocation5 [shape = 'u8[65536]{0}', space=vmem, size = 0x10000, scoped, tag = 'input window, operand 3, single buffered']
    #allocation6 [shape = 's32[1]{0}', space=sflag, size = 0x4, scoped, tag = 'scoped memory for tpu_custom_call.1']
    #allocation7 [shape = 'u8[32768]{0}', space=vmem, size = 0x8000, scoped, tag = 'output window, operand 0, single buffered']
    %10 = vsyncpa [#allocation3], 0
    %11 = vsyncpa [#allocation6], 0
    %12 = vsyncpa [#allocation4], 0
    // Predicated region
    $region2: #{tpu_custom_call.1} parent=1 // pred_check
      _
    $region3: #{tpu_custom_call.1} parent=1 // pred_check_branch
      %14 = sbr.rel (0) target = $region5
    $region4: #{tpu_custom_call.1} parent=1 // pred_region
      _
    $region5: #{tpu_custom_call.1} parent=1 // pred_fallthru
      _
    // Predicated region
    $region6: #{tpu_custom_call.1} parent=1 // pred_check
      _
    $region7: #{tpu_custom_call.1} parent=1 // pred_check_branch
      %16 = sbr.rel (0) target = $region9
    $region8: #{tpu_custom_call.1} parent=1 // pred_region
      _
    $region9: #{tpu_custom_call.1} parent=1 // pred_fallthru
      _
    // Predicated region
    $region10: #{tpu_custom_call.1} parent=1 // pred_check
      _
    $region11: #{tpu_custom_call.1} parent=1 // pred_check_branch
      %18 = sbr.rel (0) target = $region13
    $region12: #{tpu_custom_call.1} parent=1 // pred_region
      %20 = vsyncadd [#allocation3], 0
      %s21 = sshll.u32 %s2, 4
      %s22 = int_to_ptr.hbm [resolvable:$true] %s21
      %s23 = sshll.u32 [#allocation2], 4
      %s24 = int_to_ptr.vmem [resolvable:$true] %s23
      %29 = dma.hbm_to_vmem [thread:$0]  %s22, 2048, %s24, [#allocation3], 128, 128, 8
    $region13: #{tpu_custom_call.1} parent=1 // pred_fallthru
      _
    // Predicated region
    $region14: #{tpu_custom_call.1} parent=1 // pred_check
      _
    $region15: #{tpu_custom_call.1} parent=1 // pred_check_branch
      %31 = sbr.rel (0) target = $region17
    $region16: #{tpu_custom_call.1} parent=1 // pred_region
      %33 = vsyncadd [#allocation6], 0
      %s34 = sshll.u32 %s3, 4
      %s35 = int_to_ptr.hbm [resolvable:$true] %s34
      %s36 = sshll.u32 [#allocation5], 4
      %s37 = int_to_ptr.vmem [resolvable:$true] %s36
      %42 = dma.hbm_to_vmem [thread:$0]  %s35, 2048, %s37, [#allocation6], 128, 128, 8
    $region17: #{tpu_custom_call.1} parent=1 // pred_fallthru
      _
    // Predicated region
    $region18: #{tpu_custom_call.1} parent=1 // pred_check
      _
    $region19: #{tpu_custom_call.1} parent=1 // pred_check_branch
      %44 = sbr.rel (0) target = $region21
    $region20: #{tpu_custom_call.1} parent=1 // pred_region
      _
    $region21: #{tpu_custom_call.1} parent=1 // pred_fallthru
      _
    // Predicated region
    $region22: #{tpu_custom_call.1} parent=1 // pred_check
      _
    $region23: #{tpu_custom_call.1} parent=1 // pred_check_branch
      %46 = sbr.rel (0) target = $region25
    $region24: #{tpu_custom_call.1} parent=1 // pred_region
      %48 = dma.done [#allocation3], 2048
    $region25: #{tpu_custom_call.1} parent=1 // pred_fallthru
      _
    // Predicated region
    $region26: #{tpu_custom_call.1} parent=1 // pred_check
      _
    $region27: #{tpu_custom_call.1} parent=1 // pred_check_branch
      %50 = sbr.rel (0) target = $region29
    $region28: #{tpu_custom_call.1} parent=1 // pred_region
      %52 = dma.done [#allocation6], 2048
    $region29: #{tpu_custom_call.1} parent=1 // pred_fallthru
      _
    %v53 = vld [vmem:[%s0] sm:$0xff]
    %v54 = vld [vmem:[%s0 + $0x8] sm:$0xff]
    %v55 = vld [vmem:[%s0 + $0x10] sm:$0xff]
    %v56 = vld [vmem:[%s0 + $0x18] sm:$0xff]
    %v57 = vld [vmem:[%s0 + $0x20] sm:$0xff]
    %v58 = vld [vmem:[%s0 + $0x28] sm:$0xff]
    %v59 = vld [vmem:[%s0 + $0x30] sm:$0xff]
    %v60 = vld [vmem:[%s0 + $0x38] sm:$0xff]
    %v61 = vld [vmem:[%s4] sm:$0x7]
    %v62 = vld [vmem:[%s1] sm:$0xff]
    %v63 = vperm.slane %v61, 0
    %vm64 = vcmask 64512
    %v66 = vsel %vm64, %v53, 0
    %v69 = vsel %vm64, %v54, 0
    %v72 = vsel %vm64, %v55, 0
    %v75 = vsel %vm64, %v56, 0
    %v78 = vsel %vm64, %v57, 0
    %v81 = vsel %vm64, %v58, 0
    %v84 = vsel %vm64, %v59, 0
    %v87 = vsel %vm64, %v60, 0
    %89 = vmatpush.msra.mxu0 0.0
    %90 = vmatpush.msra.mxu0 0.0
    %91 = vmatpush.msra.mxu0 0.0
    %92 = vmatpush.msra.mxu0 0.0
    %93 = vmatpush.msra.mxu0 0.0
    %94 = vmatpush.msra.mxu0 0.0
    %95 = vmatpush.msra.mxu0 0.0
    %96 = vmatpush.msra.mxu0 0.0
    %97 = vmatpush.msra.mxu0 0.0
    %98 = vmatpush.msra.mxu0 0.0
    %99 = vmatpush.msra.mxu0 0.0
    %100 = vmatpush.msra.mxu0 0.0
    %101 = vmatpush.msra.mxu0 0.0
    %102 = vmatpush.msra.mxu0 0.0
    %103 = vmatpush.msra.mxu0 0.0
    %104 = vmatpush.msra.mxu0 %v62
    %105 = vmatmul.f32.gmra.mxu0 %v66
    %v106 = vpop.f32.mrf.mxu0
    %v107 = vadd.f32 %v63, %v106
    %108 = vmatmul.f32.gmra.mxu0 %v69
    %v109 = vpop.f32.mrf.mxu0
    %v110 = vadd.f32 %v63, %v109
    %111 = vmatmul.f32.gmra.mxu0 %v72
    %v112 = vpop.f32.mrf.mxu0
    %v113 = vadd.f32 %v63, %v112
    %114 = vmatmul.f32.gmra.mxu0 %v75
    %v115 = vpop.f32.mrf.mxu0
    %v116 = vadd.f32 %v63, %v115
    %117 = vmatmul.f32.gmra.mxu0 %v78
    %v118 = vpop.f32.mrf.mxu0
    %v119 = vadd.f32 %v63, %v118
    %120 = vmatmul.f32.gmra.mxu0 %v81
    %v121 = vpop.f32.mrf.mxu0
    %v122 = vadd.f32 %v63, %v121
    %123 = vmatmul.f32.gmra.mxu0 %v84
    %v124 = vpop.f32.mrf.mxu0
    %v125 = vadd.f32 %v63, %v124
    %126 = vmatmul.f32.gmra.mxu0 %v87
    %v127 = vpop.f32.mrf.mxu0
    %v128 = vadd.f32 %v63, %v127
    %129 = vdwg.mxu0
    %v130 = vmax.f32 %v107, 0.0
    %v131 = vmax.f32 %v110, 0.0
    %v132 = vmax.f32 %v113, 0.0
    %v133 = vmax.f32 %v116, 0.0
    %v134 = vmax.f32 %v119, 0.0
    %v135 = vmax.f32 %v122, 0.0
    %v136 = vmax.f32 %v125, 0.0
    %v137 = vmax.f32 %v128, 0.0
    %v138 = vld [vmem:[#allocation2] sm:$0xff]
    %v139 = vld [vmem:[#allocation2 + $0x8] sm:$0xff]
    %v140 = vld [vmem:[#allocation2 + $0x10] sm:$0xff]
    %v141 = vld [vmem:[#allocation2 + $0x18] sm:$0xff]
    %v142 = vld [vmem:[#allocation2 + $0x20] sm:$0xff]
    %v143 = vld [vmem:[#allocation2 + $0x28] sm:$0xff]
    %v144 = vld [vmem:[#allocation2 + $0x30] sm:$0xff]
    %v145 = vld [vmem:[#allocation2 + $0x38] sm:$0xff]
    %v146 = vld [vmem:[#allocation2 + $0x40] sm:$0xff]
    %v147 = vld [vmem:[#allocation2 + $0x48] sm:$0xff]
    %v148 = vld [vmem:[#allocation2 + $0x50] sm:$0xff]
    %v149 = vld [vmem:[#allocation2 + $0x58] sm:$0xff]
    %v150 = vld [vmem:[#allocation2 + $0x60] sm:$0xff]
    %v151 = vld [vmem:[#allocation2 + $0x68] sm:$0xff]
    %v152 = vld [vmem:[#allocation2 + $0x70] sm:$0xff]
    %v153 = vld [vmem:[#allocation2 + $0x78] sm:$0xff]
    %v154 = vperm.slane %v61, 1
    %155 = vmatpush.msra.mxu0 %v153
    %156 = vmatpush.msra.mxu0 %v152
    %157 = vmatpush.msra.mxu0 %v151
    %158 = vmatpush.msra.mxu0 %v150
    %159 = vmatpush.msra.mxu0 %v149
    %160 = vmatpush.msra.mxu0 %v148
    %161 = vmatpush.msra.mxu0 %v147
    %162 = vmatpush.msra.mxu0 %v146
    %163 = vmatpush.msra.mxu0 %v145
    %164 = vmatpush.msra.mxu0 %v144
    %165 = vmatpush.msra.mxu0 %v143
    %166 = vmatpush.msra.mxu0 %v142
    %167 = vmatpush.msra.mxu0 %v141
    %168 = vmatpush.msra.mxu0 %v140
    %169 = vmatpush.msra.mxu0 %v139
    %170 = vmatpush.msra.mxu0 %v138
    %171 = vmatmul.f32.gmra.mxu0 %v130
    %v172 = vpop.f32.mrf.mxu0
    %v173 = vadd.f32 %v154, %v172
    %174 = vmatmul.f32.gmra.mxu0 %v131
    %v175 = vpop.f32.mrf.mxu0
    %v176 = vadd.f32 %v154, %v175
    %177 = vmatmul.f32.gmra.mxu0 %v132
    %v178 = vpop.f32.mrf.mxu0
    %v179 = vadd.f32 %v154, %v178
    %180 = vmatmul.f32.gmra.mxu0 %v133
    %v181 = vpop.f32.mrf.mxu0
    %v182 = vadd.f32 %v154, %v181
    %183 = vmatmul.f32.gmra.mxu0 %v134
    %v184 = vpop.f32.mrf.mxu0
    %v185 = vadd.f32 %v154, %v184
    %186 = vmatmul.f32.gmra.mxu0 %v135
    %v187 = vpop.f32.mrf.mxu0
    %v188 = vadd.f32 %v154, %v187
    %189 = vmatmul.f32.gmra.mxu0 %v136
    %v190 = vpop.f32.mrf.mxu0
    %v191 = vadd.f32 %v154, %v190
    %192 = vmatmul.f32.gmra.mxu0 %v137
    %v193 = vpop.f32.mrf.mxu0
    %v194 = vadd.f32 %v154, %v193
    %195 = vdwg.mxu0
    %v196 = vmax.f32 %v173, 0.0
    %v197 = vmax.f32 %v176, 0.0
    %v198 = vmax.f32 %v179, 0.0
    %v199 = vmax.f32 %v182, 0.0
    %v200 = vmax.f32 %v185, 0.0
    %v201 = vmax.f32 %v188, 0.0
    %v202 = vmax.f32 %v191, 0.0
    %v203 = vmax.f32 %v194, 0.0
    %v204 = vld [vmem:[#allocation5] sm:$0xff]
    %v205 = vld [vmem:[#allocation5 + $0x8] sm:$0xff]
    %v206 = vld [vmem:[#allocation5 + $0x10] sm:$0xff]
    %v207 = vld [vmem:[#allocation5 + $0x18] sm:$0xff]
    %v208 = vld [vmem:[#allocation5 + $0x20] sm:$0xff]
    %v209 = vld [vmem:[#allocation5 + $0x28] sm:$0xff]
    %v210 = vld [vmem:[#allocation5 + $0x30] sm:$0xff]
    %v211 = vld [vmem:[#allocation5 + $0x38] sm:$0xff]
    %v212 = vld [vmem:[#allocation5 + $0x40] sm:$0xff]
    %v213 = vld [vmem:[#allocation5 + $0x48] sm:$0xff]
    %v214 = vld [vmem:[#allocation5 + $0x50] sm:$0xff]
    %v215 = vld [vmem:[#allocation5 + $0x58] sm:$0xff]
    %v216 = vld [vmem:[#allocation5 + $0x60] sm:$0xff]
    %v217 = vld [vmem:[#allocation5 + $0x68] sm:$0xff]
    %v218 = vld [vmem:[#allocation5 + $0x70] sm:$0xff]
    %v219 = vld [vmem:[#allocation5 + $0x78] sm:$0xff]
    %v220 = vperm.slane %v61, 2
    %221 = vmatpush.msra.mxu0 %v219
    %222 = vmatpush.msra.mxu0 %v218
    %223 = vmatpush.msra.mxu0 %v217
    %224 = vmatpush.msra.mxu0 %v216
    %225 = vmatpush.msra.mxu0 %v215
    %226 = vmatpush.msra.mxu0 %v214
    %227 = vmatpush.msra.mxu0 %v213
    %228 = vmatpush.msra.mxu0 %v212
    %229 = vmatpush.msra.mxu0 %v211
    %230 = vmatpush.msra.mxu0 %v210
    %231 = vmatpush.msra.mxu0 %v209
    %232 = vmatpush.msra.mxu0 %v208
    %233 = vmatpush.msra.mxu0 %v207
    %234 = vmatpush.msra.mxu0 %v206
    %235 = vmatpush.msra.mxu0 %v205
    %236 = vmatpush.msra.mxu0 %v204
    %237 = vmatmul.f32.gmra.mxu0 %v196
    %v238 = vpop.f32.mrf.mxu0
    %v239 = vadd.f32 %v220, %v238
    %240 = vmatmul.f32.gmra.mxu0 %v197
    %v241 = vpop.f32.mrf.mxu0
    %v242 = vadd.f32 %v220, %v241
    %243 = vmatmul.f32.gmra.mxu0 %v198
    %v244 = vpop.f32.mrf.mxu0
    %v245 = vadd.f32 %v220, %v244
    %246 = vmatmul.f32.gmra.mxu0 %v199
    %v247 = vpop.f32.mrf.mxu0
    %v248 = vadd.f32 %v220, %v247
    %249 = vmatmul.f32.gmra.mxu0 %v200
    %v250 = vpop.f32.mrf.mxu0
    %v251 = vadd.f32 %v220, %v250
    %252 = vmatmul.f32.gmra.mxu0 %v201
    %v253 = vpop.f32.mrf.mxu0
    %v254 = vadd.f32 %v220, %v253
    %255 = vmatmul.f32.gmra.mxu0 %v202
    %v256 = vpop.f32.mrf.mxu0
    %v257 = vadd.f32 %v220, %v256
    %258 = vmatmul.f32.gmra.mxu0 %v203
    %v259 = vpop.f32.mrf.mxu0
    %v260 = vadd.f32 %v220, %v259
    %261 = vdwg.mxu0
    %262 = vst [vmem:[#allocation7] sm:$0xff] %v239
    %263 = vst [vmem:[#allocation7 + $0x8] sm:$0xff] %v242
    %264 = vst [vmem:[#allocation7 + $0x10] sm:$0xff] %v245
    %265 = vst [vmem:[#allocation7 + $0x18] sm:$0xff] %v248
    %266 = vst [vmem:[#allocation7 + $0x20] sm:$0xff] %v251
    %267 = vst [vmem:[#allocation7 + $0x28] sm:$0xff] %v254
    %268 = vst [vmem:[#allocation7 + $0x30] sm:$0xff] %v257
    %269 = vst [vmem:[#allocation7 + $0x38] sm:$0xff] %v260
    // Predicated region
    $region30: #{tpu_custom_call.1} parent=1 // pred_check
      _
    $region31: #{tpu_custom_call.1} parent=1 // pred_check_branch
      %271 = sbr.rel (0) target = $region33
    $region32: #{tpu_custom_call.1} parent=1 // pred_region
      %273 = vsyncadd [#allocation4], 0
      %s274 = sshll.u32 [#allocation7], 4
      %s275 = int_to_ptr.vmem [resolvable:$true] %s274
      %s276 = sshll.u32 %s5, 4
      %s277 = int_to_ptr.hbm [resolvable:$true] %s276
      %282 = dma.vmem_to_hbm [thread:$0]  %s275, 1024, %s277, [#allocation4], 128, 128, 8
    $region33: #{tpu_custom_call.1} parent=1 // pred_fallthru
      _
    // Predicated region
    $region34: #{tpu_custom_call.1} parent=1 // pred_check
      _
    $region35: #{tpu_custom_call.1} parent=1 // pred_check_branch
      %284 = sbr.rel (0) target = $region37
    $region36: #{tpu_custom_call.1} parent=1 // pred_region
      %286 = dma.done [#allocation4], 1024
    $region37: #{tpu_custom_call.1} parent=1 // pred_fallthru
      _
    %287 = vsyncpa [#allocation3], 1
    %288 = vsyncpa [#allocation6], 1
    %289 = vsyncpa [#allocation4], 1

</llo_original>
